<compile_context>
chip_gen: v7x
topology: tpu7x:2x2x1
jax: 0.10.0
libtpu: 0.0.40
codegen_flags: <defaults>
</compile_context>

<pallas_src>
import jax
import jax.numpy as jnp
from jax.experimental import pallas as pl
from jax.experimental.pallas import tpu as pltpu


def _build_kernel(sel_cols, num_heads):
    """Kernel: one grid step = one batch tile; heads statically unrolled."""

    def kernel(gt_ref, *refs):
        logit_refs = refs[:num_heads]
        out_ref = refs[num_heads]

        labels_all = gt_ref[...]                                    # (Bt, L) i32
        # Hoisted: iota over the label columns (used for every head).
        lcol = jax.lax.broadcasted_iota(jnp.int32, labels_all.shape, 1)

        acc = jnp.zeros(out_ref.shape, jnp.float32)                 # (Bt, 1)
        iota_cache = {}                                             # hoist per-C iota
        for h in range(num_heads):
            x = logit_refs[h][...].astype(jnp.float32)              # (Bt, C_h) f32
            c_h = x.shape[-1]
            if c_h not in iota_cache:
                iota_cache[c_h] = jax.lax.broadcasted_iota(jnp.int32, x.shape, 1)
            col = iota_cache[c_h]

            # Pick this head's labels from the (Bt, L) block via one-hot select.
            labels = jnp.sum(
                jnp.where(lcol == sel_cols[h], labels_all, 0),
                axis=-1, keepdims=True)                             # (Bt, 1)

            # Numerically-stable logsumexp over classes (lane axis).
            m = jnp.max(x, axis=-1, keepdims=True)                  # (Bt, 1)
            lse = m + jnp.log(jnp.sum(jnp.exp(x - m), axis=-1, keepdims=True))

            # Logit at the target class via one-hot select + lane reduce.
            picked = jnp.sum(jnp.where(col == labels, x, 0.0),
                             axis=-1, keepdims=True)                # (Bt, 1)

            acc = acc + (lse - picked)

        # NOTE: output traffic (B*4 bytes) is negligible vs. the logits stream;
        # a lane-dense (1, Bt) layout is a possible further micro-opt at B>=512.
        out_ref[...] = acc

    return kernel


def _multi_label_cross_entropy_sum(sel_logits, ground_truths_i32, sel_cols):
    """sel_logits: list of (B, C_i) arrays; ground_truths_i32: (B, L) int32."""
    B, L = ground_truths_i32.shape
    num_heads = len(sel_logits)
    head_cs = [int(x.shape[-1]) for x in sel_logits]

    # --- batch-tile selection, budgeted for scoped VMEM on all generations ---
    per_row_bytes = (sum(c * x.dtype.itemsize for c, x in zip(head_cs, sel_logits))
                     + L * 4 + 4)
    budget = 16 << 20                      # per-buffer input bytes (x2 buffers)
    if B * per_row_bytes <= budget or B <= 16:
        bt = B                             # full dim: always layout-legal
    else:
        bt = max(16, (budget // per_row_bytes) // 16 * 16)   # sublane-aligned
        bt = min(bt, B)
    grid_b = pl.cdiv(B, bt)

    tile_bytes = bt * per_row_bytes
    vmem_limit = int(min(48 << 20, max(16 << 20, 4 * tile_bytes)))

    in_specs = [pl.BlockSpec((bt, L), lambda b: (b, 0))]           # ground truths
    for c in head_cs:
        in_specs.append(pl.BlockSpec((bt, c), lambda b: (b, 0)))   # one per head
    out_spec = pl.BlockSpec((bt, 1), lambda b: (b, 0))

    total_elems = sum(B * c for c in head_cs)
    logits_bytes = sum(B * c * x.dtype.itemsize for c, x in zip(head_cs, sel_logits))
    cost = pl.CostEstimate(
        flops=6 * total_elems,
        transcendentals=total_elems,
        bytes_accessed=logits_bytes + B * L * 4 + B * 4)

    out = pl.pallas_call(
        _build_kernel(tuple(sel_cols), num_heads),
        out_shape=jax.ShapeDtypeStruct((B, 1), jnp.float32),
        grid=(grid_b,),
        in_specs=in_specs,
        out_specs=out_spec,
        compiler_params=pltpu.CompilerParams(
            dimension_semantics=("parallel",),
            vmem_limit_bytes=vmem_limit),
        cost_estimate=cost,
    )(ground_truths_i32, *sel_logits)
    return out[:, 0]


def metric_selector_forward(logits, ground_truths, *,
                            has_joint_label: bool,
                            joint_label_training: bool) -> jnp.ndarray:
    """JAX/Pallas equivalent of MetricSelectorWrapper.forward.

    logits: tuple of (B, C_i) arrays (class counts may differ per head)
    ground_truths: (B, num_labels) integer array
    returns: (B,) float32 per-sample loss summed over the selected label heads
    """
    num_labels = len(logits)
    if num_labels != ground_truths.shape[1]:
        raise ValueError(
            "The number of predictions must match the number of ground truth labels")

    if not has_joint_label and joint_label_training:
        joint_label_training = False   # mirrors the warning path in __init__

    if has_joint_label:
        idx = [num_labels - 1] if joint_label_training else list(range(num_labels - 1))
    else:
        idx = list(range(num_labels))

    sel_logits = [logits[i] for i in idx]
    gt_i32 = ground_truths.astype(jnp.int32)
    return _multi_label_cross_entropy_sum(sel_logits, gt_i32, idx)


def _reference(logits, ground_truths, idx):
    """Pure-JAX reference: sum of per-sample cross-entropies over selected heads."""
    total = jnp.zeros((ground_truths.shape[0],), jnp.float32)
    for i in idx:
        x = logits[i].astype(jnp.float32)
        lab = ground_truths[:, i]
        lse = jax.scipy.special.logsumexp(x, axis=-1)
        picked = jnp.take_along_axis(x, lab[:, None], axis=-1)[:, 0]
        total = total + (lse - picked)
    return total


if __name__ == "__main__":
    key = jax.random.PRNGKey(0)
    B, L = 8, 3
    Cs = (16, 32, 128)   # e.g. verb / noun / joint(action) class counts (differ per head)

    keys = jax.random.split(key, 2 * L)
    logits = tuple(
        jax.random.normal(keys[i], (B, Cs[i]), dtype=jnp.float32).astype(jnp.bfloat16)
        for i in range(L))
    ground_truths = jnp.stack(
        [jax.random.randint(keys[L + i], (B,), 0, Cs[i], dtype=jnp.int32)
         for i in range(L)], axis=1)                                  # (B, L)

    # Path 1: dataset has a joint label, training on the non-joint heads.
    loss = metric_selector_forward(
        logits, ground_truths, has_joint_label=True, joint_label_training=False)
    loss = jax.block_until_ready(loss)
    ref = _reference(logits, ground_truths, list(range(L - 1)))
    assert loss.shape == (B,)
    assert jnp.allclose(loss, ref, atol=1e-4, rtol=1e-4), (loss, ref)

    # Path 2: joint-label training (single, wider head with a different C).
    loss_j = metric_selector_forward(
        logits, ground_truths, has_joint_label=True, joint_label_training=True)
    loss_j = jax.block_until_ready(loss_j)
    ref_j = _reference(logits, ground_truths, [L - 1])
    assert jnp.allclose(loss_j, ref_j, atol=1e-4, rtol=1e-4), (loss_j, ref_j)

    print("KERNEL_OK")
</pallas_src>

<mosaic_0001>
module attributes {stable_mosaic.version = 11 : i64} {
  func.func @kernel(%arg0: i32, %arg1: memref<8x3xi32, #tpu.memory_space<vmem>>, %arg2: memref<8x16xbf16, #tpu.memory_space<vmem>>, %arg3: memref<8x32xbf16, #tpu.memory_space<vmem>>, %arg4: memref<8x1xf32, #tpu.memory_space<vmem>>) attributes {dimension_semantics = [#tpu.dimension_semantics<parallel>], iteration_bounds = array<i64: 1>, scalar_prefetch = 0 : i64, scratch_operands = 0 : i64, tpu.core_type = #tpu.core_type<tc>, window_params = [{transform_indices = @transform_0, window_bounds = array<i64: 8, 3>}, {transform_indices = @transform_1, window_bounds = array<i64: 8, 16>}, {transform_indices = @transform_2, window_bounds = array<i64: 8, 32>}, {transform_indices = @transform_3, window_bounds = array<i64: 8, 1>}]} {
    %c0 = arith.constant 0 : index
    %c0_0 = arith.constant 0 : index
    %0 = vector.load %arg1[%c0, %c0_0] : memref<8x3xi32, #tpu.memory_space<vmem>>, vector<8x3xi32>
    %1 = tpu.iota {dimensions = array<i32: 1>} : vector<8x3xi32>
    %cst = arith.constant 0.000000e+00 : f32
    %2 = vector.broadcast %cst : f32 to vector<8x1xf32>
    %c0_1 = arith.constant 0 : index
    %c0_2 = arith.constant 0 : index
    %3 = vector.load %arg2[%c0_1, %c0_2] : memref<8x16xbf16, #tpu.memory_space<vmem>>, vector<8x16xbf16>
    %4 = arith.extf %3 : vector<8x16xbf16> to vector<8x16xf32>
    %5 = tpu.iota {dimensions = array<i32: 1>} : vector<8x16xi32>
    %c0_i32 = arith.constant 0 : i32
    %6 = vector.broadcast %c0_i32 : i32 to vector<8x3xi32>
    %7 = arith.cmpi eq, %1, %6 : vector<8x3xi32>
    %c0_i32_3 = arith.constant 0 : i32
    %8 = vector.broadcast %c0_i32_3 : i32 to vector<8x3xi32>
    %9 = arith.select %7, %0, %8 : vector<8x3xi1>, vector<8x3xi32>
    %cst_4 = arith.constant dense<0> : vector<8xi32>
    %10 = vector.multi_reduction <add>, %9, %cst_4 [1] : vector<8x3xi32> to vector<8xi32>
    %11 = vector.shape_cast %10 : vector<8xi32> to vector<8x1xi32>
    %cst_5 = arith.constant dense<0xFF800000> : vector<8xf32>
    %12 = vector.multi_reduction <maximumf>, %4, %cst_5 [1] : vector<8x16xf32> to vector<8xf32>
    %13 = vector.shape_cast %12 : vector<8xf32> to vector<8x1xf32>
    %14 = vector.broadcast %13 : vector<8x1xf32> to vector<8x16xf32>
    %15 = arith.subf %4, %14 : vector<8x16xf32>
    %16 = math.exp %15 : vector<8x16xf32>
    %cst_6 = arith.constant dense<0.000000e+00> : vector<8xf32>
    %17 = vector.multi_reduction <add>, %16, %cst_6 [1] : vector<8x16xf32> to vector<8xf32>
    %18 = vector.shape_cast %17 : vector<8xf32> to vector<8x1xf32>
    %19 = math.log %18 : vector<8x1xf32>
    %20 = arith.addf %13, %19 : vector<8x1xf32>
    %21 = vector.broadcast %11 : vector<8x1xi32> to vector<8x16xi32>
    %22 = arith.cmpi eq, %5, %21 : vector<8x16xi32>
    %cst_7 = arith.constant 0.000000e+00 : f32
    %23 = vector.broadcast %cst_7 : f32 to vector<8x16xf32>
    %24 = arith.select %22, %4, %23 : vector<8x16xi1>, vector<8x16xf32>
    %cst_8 = arith.constant dense<0.000000e+00> : vector<8xf32>
    %25 = vector.multi_reduction <add>, %24, %cst_8 [1] : vector<8x16xf32> to vector<8xf32>
    %26 = vector.shape_cast %25 : vector<8xf32> to vector<8x1xf32>
    %27 = arith.subf %20, %26 : vector<8x1xf32>
    %28 = arith.addf %2, %27 : vector<8x1xf32>
    %c0_9 = arith.constant 0 : index
    %c0_10 = arith.constant 0 : index
    %29 = vector.load %arg3[%c0_9, %c0_10] : memref<8x32xbf16, #tpu.memory_space<vmem>>, vector<8x32xbf16>
    %30 = arith.extf %29 : vector<8x32xbf16> to vector<8x32xf32>
    %31 = tpu.iota {dimensions = array<i32: 1>} : vector<8x32xi32>
    %c1_i32 = arith.constant 1 : i32
    %32 = vector.broadcast %c1_i32 : i32 to vector<8x3xi32>
    %33 = arith.cmpi eq, %1, %32 : vector<8x3xi32>
    %c0_i32_11 = arith.constant 0 : i32
    %34 = vector.broadcast %c0_i32_11 : i32 to vector<8x3xi32>
    %35 = arith.select %33, %0, %34 : vector<8x3xi1>, vector<8x3xi32>
    %cst_12 = arith.constant dense<0> : vector<8xi32>
    %36 = vector.multi_reduction <add>, %35, %cst_12 [1] : vector<8x3xi32> to vector<8xi32>
    %37 = vector.shape_cast %36 : vector<8xi32> to vector<8x1xi32>
    %cst_13 = arith.constant dense<0xFF800000> : vector<8xf32>
    %38 = vector.multi_reduction <maximumf>, %30, %cst_13 [1] : vector<8x32xf32> to vector<8xf32>
    %39 = vector.shape_cast %38 : vector<8xf32> to vector<8x1xf32>
    %40 = vector.broadcast %39 : vector<8x1xf32> to vector<8x32xf32>
    %41 = arith.subf %30, %40 : vector<8x32xf32>
    %42 = math.exp %41 : vector<8x32xf32>
    %cst_14 = arith.constant dense<0.000000e+00> : vector<8xf32>
    %43 = vector.multi_reduction <add>, %42, %cst_14 [1] : vector<8x32xf32> to vector<8xf32>
    %44 = vector.shape_cast %43 : vector<8xf32> to vector<8x1xf32>
    %45 = math.log %44 : vector<8x1xf32>
    %46 = arith.addf %39, %45 : vector<8x1xf32>
    %47 = vector.broadcast %37 : vector<8x1xi32> to vector<8x32xi32>
    %48 = arith.cmpi eq, %31, %47 : vector<8x32xi32>
    %cst_15 = arith.constant 0.000000e+00 : f32
    %49 = vector.broadcast %cst_15 : f32 to vector<8x32xf32>
    %50 = arith.select %48, %30, %49 : vector<8x32xi1>, vector<8x32xf32>
    %cst_16 = arith.constant dense<0.000000e+00> : vector<8xf32>
    %51 = vector.multi_reduction <add>, %50, %cst_16 [1] : vector<8x32xf32> to vector<8xf32>
    %52 = vector.shape_cast %51 : vector<8xf32> to vector<8x1xf32>
    %53 = arith.subf %46, %52 : vector<8x1xf32>
    %54 = arith.addf %28, %53 : vector<8x1xf32>
    %c0_17 = arith.constant 0 : index
    %c0_18 = arith.constant 0 : index
    %55 = vector.load %arg4[%c0_17, %c0_18] : memref<8x1xf32, #tpu.memory_space<vmem>>, vector<8x1xf32>
    tpu.vector_store %arg4[%c0_17, %c0_18], %54 {strides = array<i32>} : memref<8x1xf32, #tpu.memory_space<vmem>>, vector<8x1xf32>,
    return
  }
  func.func @transform_0(%arg0: i32) -> (i32, i32) {
    %c0_i32 = arith.constant 0 : i32
    %c0_i32_0 = arith.constant 0 : i32
    return %arg0, %c0_i32 : i32, i32
  }
  func.func @transform_1(%arg0: i32) -> (i32, i32) {
    %c0_i32 = arith.constant 0 : i32
    %c0_i32_0 = arith.constant 0 : i32
    return %arg0, %c0_i32 : i32, i32
  }
  func.func @transform_2(%arg0: i32) -> (i32, i32) {
    %c0_i32 = arith.constant 0 : i32
    %c0_i32_0 = arith.constant 0 : i32
    return %arg0, %c0_i32 : i32, i32
  }
  func.func @transform_3(%arg0: i32) -> (i32, i32) {
    %c0_i32 = arith.constant 0 : i32
    %c0_i32_0 = arith.constant 0 : i32
    return %arg0, %c0_i32 : i32, i32
  }
}

</mosaic_0001>

<llo_original>
// kernel: tpu_custom_call.1
$region0: #{tpu_custom_call.1}
  #allocation0 [shape = 'u32[]', space=smem, size = 0x4, offset = 0x4, fixed_abs, tag = 'smem constant byte address 0x4 - core index']
  #allocation1 [shape = 'u32[144,128]{1,0:T(1,128)}', space=vmem, size = 0x12000, scoped, tag = 'internal scratch']
  %s0 = inlined_call_operand.vmem [shape: s32[8,3], index: 0, kind: input, shape index: {}]
  %s1 = inlined_call_operand.vmem [shape: bf16[8,16], index: 1, kind: input, shape index: {}]
  %s2 = inlined_call_operand.vmem [shape: bf16[8,32], index: 2, kind: input, shape index: {}]
  %s3 = inlined_call_operand.vmem [shape: f32[8,1], index: 3, kind: output, shape index: {}]
  %s4 = sld [smem:[#allocation0]]
  $region22: #{tpu_custom_call.1} parent=0
    _
  %s6 = ssub.s32 1, %s4
  %s7 = scalar_select 0, %s6, %s4
  // Predicated region
  $region2: #{tpu_custom_call.1} parent=0 // pred_check
    _
  $region3: #{tpu_custom_call.1} parent=0 // pred_check_branch
    %9 = sbr.rel (0) target = $region5
  $region4: #{tpu_custom_call.1} parent=0 // pred_region
    _
  $region5: #{tpu_custom_call.1} parent=0 // pred_fallthru
    _
  // Predicated region
  $region6: #{tpu_custom_call.1} parent=0 // pred_check
    _
  $region7: #{tpu_custom_call.1} parent=0 // pred_check_branch
    %11 = sbr.rel (0) target = $region9
  $region8: #{tpu_custom_call.1} parent=0 // pred_region
    _
  $region9: #{tpu_custom_call.1} parent=0 // pred_fallthru
    _
  // Predicated region
  $region10: #{tpu_custom_call.1} parent=0 // pred_check
    _
  $region11: #{tpu_custom_call.1} parent=0 // pred_check_branch
    %13 = sbr.rel (0) target = $region13
  $region12: #{tpu_custom_call.1} parent=0 // pred_region
    _
  $region13: #{tpu_custom_call.1} parent=0 // pred_fallthru
    _
  %v14 = vld [vmem:[%s0] sm:$0xff]
  %v15 = vlaneseq
  %v16 = vand.u32 %v15, 127
  %v17 = vld [vmem:[%s1] sm:$0xf]
  %v18 = vunpack.c.l.bf16 %v17
  %vm19 = vcmp.eq.s32.totalorder %v16, 0
  %v20 = vsel %vm19, %v14, 0
  %vm21 = vcmask 23552
  %v22 = vsel %vm21, %v20, 0
  %v23 = vand.u32 %v22, 65535
  %v24 = vshrl.u32 %v22, 16
  %v25 = vcvt.s32.f32 %v23
  %v26 = vcvt.s32.f32 %v24
  %27 = vadd.xlane.f32.xlu0 %v25
  %v28 = vpop.xlane.xlu0 %27
  %29 = vadd.xlane.f32.xlu0 %v26
  %v30 = vpop.xlane.xlu0 %29
  %v31 = vcvt.f32.s32 %v28
  %v32 = vcvt.f32.s32 %v30
  %v33 = vshll.u32 %v32, 16
  %v34 = vadd.s32 %v33, %v31
  %vm35 = vcmask 130048
  %v36 = vsel %vm35, %v18, -inf
  %37 = vmax.xlane.f32.xlu0 %v36
  %v38 = vpop.xlane.xlu0 %37
  %v39 = vsub.f32 %v18, %v38
  %v40 = vmul.f32 %v39, 1.442695
  %v41 = vpow.pop %v40
  %v42 = vsel %vm35, %v41, 0.0
  %43 = vadd.xlane.f32.xlu0 %v42
  %v44 = vpop.xlane.xlu0 %43
  %v45 = vlog2.pop %v44
  %v46 = vmul.f32 %v45, 0.6931472
  %v47 = vadd.f32 %v38, %v46
  %vm48 = vcmp.eq.s32.totalorder %v16, %v34
  %v49 = vsel %vm48, %v18, 0.0
  %v50 = vsel %vm35, %v49, 0.0
  %51 = vadd.xlane.f32.xlu0 %v50
  %v52 = vpop.xlane.xlu0 %51
  %v53 = vsub.f32 %v47, %v52
  %v54 = vadd.f32 %v53, 0.0
  %v55 = vld [vmem:[%s2] sm:$0xf]
  %v56 = vunpack.c.l.bf16 %v55
  %vm57 = vcmp.eq.s32.totalorder %v16, 1
  %v58 = vsel %vm57, %v14, 0
  %v59 = vsel %vm21, %v58, 0
  %v60 = vand.u32 %v59, 65535
  %v61 = vshrl.u32 %v59, 16
  %v62 = vcvt.s32.f32 %v60
  %v63 = vcvt.s32.f32 %v61
  %64 = vadd.xlane.f32.xlu0 %v62
  %v65 = vpop.xlane.xlu0 %64
  %66 = vadd.xlane.f32.xlu0 %v63
  %v67 = vpop.xlane.xlu0 %66
  %v68 = vcvt.f32.s32 %v65
  %v69 = vcvt.f32.s32 %v67
  %v70 = vshll.u32 %v69, 16
  %v71 = vadd.s32 %v70, %v68
  %vm72 = vcmask 261120
  %v73 = vsel %vm72, %v56, -inf
  %74 = vmax.xlane.f32.xlu0 %v73
  %v75 = vpop.xlane.xlu0 %74
  %v76 = vsub.f32 %v56, %v75
  %v77 = vmul.f32 %v76, 1.442695
  %v78 = vpow.pop %v77
  %v79 = vsel %vm72, %v78, 0.0
  %80 = vadd.xlane.f32.xlu0 %v79
  %v81 = vpop.xlane.xlu0 %80
  %v82 = vlog2.pop %v81
  %v83 = vmul.f32 %v82, 0.6931472
  %v84 = vadd.f32 %v75, %v83
  %vm85 = vcmp.eq.s32.totalorder %v16, %v71
  %v86 = vsel %vm85, %v56, 0.0
  %v87 = vsel %vm72, %v86, 0.0
  %88 = vadd.xlane.f32.xlu0 %v87
  %v89 = vpop.xlane.xlu0 %88
  %v90 = vsub.f32 %v84, %v89
  %v91 = vadd.f32 %v54, %v90
  %vm92 = vcmask 7168
  %93 = vst.msk [vmem:[%s3] sm:$0xff] %vm92, %v91
  // Predicated region
  $region14: #{tpu_custom_call.1} parent=0 // pred_check
    _
  $region15: #{tpu_custom_call.1} parent=0 // pred_check_branch
    %95 = sbr.rel (0) target = $region17
  $region16: #{tpu_custom_call.1} parent=0 // pred_region
    _
  $region17: #{tpu_custom_call.1} parent=0 // pred_fallthru
    _
  // Predicated region
  $region18: #{tpu_custom_call.1} parent=0 // pred_check
    _
  $region19: #{tpu_custom_call.1} parent=0 // pred_check_branch
    %97 = sbr.rel (0) target = $region21
  $region20: #{tpu_custom_call.1} parent=0 // pred_region
    _
  $region21: #{tpu_custom_call.1} parent=0 // pred_fallthru
    _

</llo_original>
